<compile_context>
chip_gen: v6e
topology: v6e:2x2x1
jax: 0.10.0
libtpu: 0.0.40
codegen_flags: <defaults>
</compile_context>

<pallas_src>
import math

import jax
import jax.numpy as jnp
from jax.experimental import pallas as pl
from jax.experimental.pallas import tpu as pltpu


# ----------------------------------------------------------------------------
# Kernels.  One grid step = (batch b, spatial tile h).  Refs:
#   w_ref    : (1, C)     VMEM  demodulated per-batch conv weight (x.dtype)
#   bias_ref : (1,)       SMEM  output bias (f32)
#   x_ref    : (C, THW)   VMEM  activation tile (native dtype, e.g. bf16)
#   skip_ref : (1, THW)   VMEM  (skip variant) pre-upsampled skip tile (native)
#   out_ref  : (1, THW)   VMEM  output tile (out dtype)
# ----------------------------------------------------------------------------
def _torgb_kernel(w_ref, bias_ref, x_ref, out_ref):
    acc = jnp.dot(w_ref[...], x_ref[...],
                  preferred_element_type=jnp.float32)            # (1, THW) f32
    out_ref[...] = (acc + bias_ref[0]).astype(out_ref.dtype)


def _torgb_skip_kernel(w_ref, bias_ref, x_ref, skip_ref, out_ref):
    acc = jnp.dot(w_ref[...], x_ref[...],
                  preferred_element_type=jnp.float32)            # (1, THW) f32
    acc = acc + bias_ref[0] + skip_ref[...].astype(jnp.float32)  # fused skip add
    out_ref[...] = acc.astype(out_ref.dtype)


# ----------------------------------------------------------------------------
# Wrapper helpers
# ----------------------------------------------------------------------------
def _modulated_weight(style, params, C):
    """Hoisted modulation + demodulation: returns (B, C) float32 weight."""
    Sd = style.shape[1]
    mod_w = params["mod_w"].astype(jnp.float32)                  # (C, Sd)
    mod_b = params["mod_b"].astype(jnp.float32)                  # (C,)
    s = jnp.dot(style.astype(jnp.float32), mod_w.T,
                precision=jax.lax.Precision.HIGHEST)
    s = s * (1.0 / math.sqrt(Sd)) + mod_b                        # (B, C)
    w = params["conv_w"].reshape(1, C).astype(jnp.float32) * s * (1.0 / math.sqrt(C))
    demod = jax.lax.rsqrt(jnp.sum(w * w, axis=1, keepdims=True) + 1e-8)
    return w * demod                                             # (B, C) f32


def _vmem_plan():
    """(per-x-tile budget, vmem_limit_bytes) sized per TPU generation."""
    phys = None
    try:
        phys = getattr(pltpu.get_tpu_info(), "vmem_capacity_bytes", None)
    except Exception:
        phys = None
    if phys is None or phys <= (64 << 20):
        # v7x (64 MiB physical VMEM) or unknown: stay conservative.
        return 12 << 20, 48 << 20
    # v5e / v6e (128 MiB physical): raise the scoped limit, use big tiles.
    return 12 << 20, 64 << 20


def _pick_hw_tile(hw, per_lane_bytes, tile_budget_bytes, min_hw_blocks):
    """Largest lane-dense (multiple-of-128) spatial tile under the byte budget.

    Returns (thw, hw_pad): the tile width and the padded spatial extent
    (multiple of thw) so every block is full and every store is unmasked.
    """
    hw128 = -(-hw // 128) * 128
    target = (tile_budget_bytes // max(1, per_lane_bytes)) // 128 * 128
    target = max(128, min(target, hw128))
    if min_hw_blocks > 1:
        # Keep >= min_hw_blocks spatial blocks (B == 1 on v7x: feed both TCs).
        target = max(128, min(target, (hw128 // min_hw_blocks) // 128 * 128))
    # Prefer a tile that divides the 128-padded extent exactly (no extra pad).
    units = hw128 // 128
    thw = None
    for d in range(target // 128, 0, -1):
        if units % d == 0:
            thw = d * 128
            break
    if thw is None or thw * 4 < target:
        thw = target                     # accept a padded tail over tiny tiles
    hw_pad = -(-hw128 // thw) * thw
    return thw, hw_pad


# ----------------------------------------------------------------------------
# Forward
# ----------------------------------------------------------------------------
def to_rgb_forward(x, style, params, skip=None, upsample=True, out_dtype=None):
    """ToRGB.forward.  x: (B, C, H, W) (f32 or bf16), style: (B, style_dim)."""
    B, C, H, W = x.shape
    HW = H * W
    x_dt = x.dtype
    out_dt = jnp.dtype(out_dtype) if out_dtype is not None else x_dt

    # Tiny (B, C) modulation/demodulation math stays in plain XLA; the weight
    # row is cast to the activation dtype so the MXU eats it natively (f32
    # accumulation via preferred_element_type).
    w3 = _modulated_weight(style, params, C).astype(x_dt).reshape(B, 1, C)
    bias = params["bias"].astype(jnp.float32).reshape(1)

    # Optional skip: x2 bilinear upsample (== F.interpolate(align_corners=False)
    # half-pixel centers), done in skip's native dtype; the add is fused into
    # the kernel.
    # TODO(synk): fuse the x2 bilinear upsample itself into the kernel (VPU
    # lerps on a low-res skip tile) to drop the full-res skip HBM round trip.
    if skip is not None and upsample:
        skip = jax.image.resize(
            skip,
            (skip.shape[0], skip.shape[1], skip.shape[2] * 2, skip.shape[3] * 2),
            method="bilinear")

    # --- generation-aware tiling --------------------------------------------
    tile_budget, vmem_limit = _vmem_plan()
    xs = x_dt.itemsize
    sub = 8 * (4 // xs)                              # sublane pack: 8 f32 / 16 bf16
    c_pad = -(-C // sub) * sub                       # VMEM rows round up to a tile
    per_lane = c_pad * xs                            # x tile bytes per lane
    per_lane += 32                                   # (1, thw) out row pads to a full tile
    if skip is not None:
        per_lane += 32                               # (1, thw) skip row, ditto
    min_hw_blocks = 2 if B == 1 else 1
    thw, hw_pad = _pick_hw_tile(HW, per_lane, tile_budget, min_hw_blocks)
    grid = (B, hw_pad // thw)

    def pad_hw(a):
        if a.shape[-1] == hw_pad:
            return a
        return jnp.pad(a, ((0, 0), (0, 0), (0, hw_pad - a.shape[-1])))

    x_flat = pad_hw(x.reshape(B, C, HW))             # native dtype, lane-padded

    in_specs = [
        pl.BlockSpec((None, 1, C), lambda b, h: (b, 0, 0)),          # weight row
        pl.BlockSpec(memory_space=pltpu.MemorySpace.SMEM),           # bias scalar
        pl.BlockSpec((None, C, thw), lambda b, h: (b, 0, h)),        # x tile
    ]
    args = [w3, bias, x_flat]

    skip_bytes = 0
    if skip is not None:
        skip_flat = pad_hw(skip.reshape(B, 1, HW))                   # native dtype
        in_specs.append(pl.BlockSpec((None, 1, thw), lambda b, h: (b, 0, h)))
        args.append(skip_flat)
        kernel = _torgb_skip_kernel
        skip_bytes = B * HW * skip.dtype.itemsize
    else:
        kernel = _torgb_kernel

    cost = pl.CostEstimate(
        flops=2 * B * C * HW,
        transcendentals=0,
        bytes_accessed=(B * C * HW * xs                      # x read
                        + B * HW * out_dt.itemsize           # out write
                        + skip_bytes                         # skip read (fused)
                        + B * C * xs))                       # weight rows

    out = pl.pallas_call(
        kernel,
        out_shape=jax.ShapeDtypeStruct((B, 1, hw_pad), out_dt),
        grid_spec=pltpu.PrefetchScalarGridSpec(
            num_scalar_prefetch=0,
            grid=grid,
            in_specs=in_specs,
            out_specs=pl.BlockSpec((None, 1, thw), lambda b, h: (b, 0, h)),
        ),
        compiler_params=pltpu.CompilerParams(
            dimension_semantics=("parallel", "parallel"),
            vmem_limit_bytes=vmem_limit),
        cost_estimate=cost,
    )(*args)

    if hw_pad != HW:
        out = out[:, :, :HW]
    return out.reshape(B, 1, H, W)


# ----------------------------------------------------------------------------
# Pure-JAX reference mirroring the PyTorch forward
# ----------------------------------------------------------------------------
def _ref_forward(x, style, params, skip=None, upsample=True, weight_dtype=None):
    B, C, H, W = x.shape
    Sd = style.shape[1]
    xf = x.astype(jnp.float32)
    s = jnp.dot(style.astype(jnp.float32), params["mod_w"].astype(jnp.float32).T,
                precision=jax.lax.Precision.HIGHEST)
    s = s * (1.0 / math.sqrt(Sd)) + params["mod_b"].astype(jnp.float32)
    w = params["conv_w"].reshape(1, C).astype(jnp.float32) * s * (1.0 / math.sqrt(C))
    demod = jax.lax.rsqrt(jnp.sum(w * w, axis=1, keepdims=True) + 1e-8)
    w = w * demod
    if weight_dtype is not None:   # mirror the kernel feeding the MXU in x.dtype
        w = w.astype(weight_dtype).astype(jnp.float32)
    out = jnp.einsum("bc,bchw->bhw", w, xf,
                     precision=jax.lax.Precision.HIGHEST)[:, None, :, :]
    out = out + params["bias"].reshape(1, 1, 1, 1).astype(jnp.float32)
    if skip is not None:
        if upsample:
            skip = jax.image.resize(
                skip, (skip.shape[0], skip.shape[1],
                       skip.shape[2] * 2, skip.shape[3] * 2),
                method="bilinear")
        out = out + skip.astype(jnp.float32)
    return out


if __name__ == "__main__":
    key = jax.random.PRNGKey(0)

    def make_params(C, Sd, k):
        k1, k2 = jax.random.split(k)
        return {
            # EqualizedLinear(style_dim, C_in): weight (C_in, Sd), bias_init=1
            "mod_w": jax.random.normal(k1, (C, Sd), dtype=jnp.float32),
            "mod_b": jnp.ones((C,), dtype=jnp.float32),
            # ModulatedConv2d weight: (1, out_channels=1, C_in, 1, 1)
            "conv_w": jax.random.normal(k2, (1, 1, C, 1, 1), dtype=jnp.float32),
            # ToRGB bias: zeros(1)
            "bias": jnp.zeros((1,), dtype=jnp.float32),
        }

    def check(out, ref, msg, atol=2e-2, rtol=2e-2):
        assert jnp.allclose(out.astype(jnp.float32), ref.astype(jnp.float32),
                            atol=atol, rtol=rtol), msg

    # --- Test 1: small shapes, f32, no skip ---------------------------------
    B, C, H, W, Sd = 2, 4, 16, 16, 8
    k_x, k_s, k_p, key = jax.random.split(key, 4)
    x = jax.random.normal(k_x, (B, C, H, W), dtype=jnp.float32)
    style = jax.random.normal(k_s, (B, Sd), dtype=jnp.float32)
    params = make_params(C, Sd, k_p)
    out = jax.block_until_ready(to_rgb_forward(x, style, params))
    assert out.shape == (B, 1, H, W) and out.dtype == jnp.float32
    check(out, _ref_forward(x, style, params), "mismatch (no-skip path)")

    # --- Test 2: fused skip-add with x2 bilinear upsample --------------------
    k_sk, key = jax.random.split(key)
    skip = jax.random.normal(k_sk, (B, 1, H // 2, W // 2), dtype=jnp.float32)
    out = jax.block_until_ready(to_rgb_forward(x, style, params, skip=skip))
    check(out, _ref_forward(x, style, params, skip=skip), "mismatch (skip path)")

    # --- Test 3: bf16 activations, larger shapes, bf16 weights/output --------
    B, C, H, W, Sd = 2, 64, 128, 128, 64
    k_x, k_s, k_p, key = jax.random.split(key, 4)
    x = jax.random.normal(k_x, (B, C, H, W), dtype=jnp.float32).astype(jnp.bfloat16)
    style = jax.random.normal(k_s, (B, Sd), dtype=jnp.float32)
    params = make_params(C, Sd, k_p)
    out = jax.block_until_ready(to_rgb_forward(x, style, params))
    assert out.shape == (B, 1, H, W) and out.dtype == jnp.bfloat16
    ref = _ref_forward(x, style, params, weight_dtype=jnp.bfloat16)
    check(out, ref, "mismatch (bf16 tiled path)")

    # --- Test 4: non-128-multiple spatial extent -> padded lane-dense tiles --
    B, C, H, W, Sd = 2, 8, 12, 12, 8
    k_x, k_s, k_p, k_sk, key = jax.random.split(key, 5)
    x = jax.random.normal(k_x, (B, C, H, W), dtype=jnp.float32)
    style = jax.random.normal(k_s, (B, Sd), dtype=jnp.float32)
    params = make_params(C, Sd, k_p)
    skip = jax.random.normal(k_sk, (B, 1, H // 2, W // 2), dtype=jnp.float32)
    out = jax.block_until_ready(to_rgb_forward(x, style, params, skip=skip))
    assert out.shape == (B, 1, H, W)
    check(out, _ref_forward(x, style, params, skip=skip), "mismatch (padded HW)")

    print("KERNEL_OK")
</pallas_src>

<mosaic_0001>
module attributes {stable_mosaic.version = 11 : i64} {
  func.func @_torgb_kernel(%arg0: i32, %arg1: i32, %arg2: memref<1x1x4xf32, #tpu.memory_space<vmem>>, %arg3: memref<1xf32, #tpu.memory_space<smem>>, %arg4: memref<1x4x256xf32, #tpu.memory_space<vmem>>, %arg5: memref<1x1x256xf32, #tpu.memory_space<vmem>>) attributes {dimension_semantics = [#tpu.dimension_semantics<parallel>, #tpu.dimension_semantics<parallel>], iteration_bounds = array<i64: 2, 1>, scalar_prefetch = 0 : i64, scratch_operands = 0 : i64, tpu.core_type = #tpu.core_type<tc>, window_params = [{transform_indices = @transform_0, window_bounds = array<i64: 1, 1, 4>}, {transform_indices = @transform_1, window_bounds = array<i64: 1>}, {transform_indices = @transform_2, window_bounds = array<i64: 1, 4, 256>}, {transform_indices = @transform_3, window_bounds = array<i64: 1, 1, 256>}]} {
    %c0 = arith.constant 0 : index
    %c0_0 = arith.constant 0 : index
    %c0_1 = arith.constant 0 : index
    %0 = vector.load %arg2[%c0, %c0_0, %c0_1] : memref<1x1x4xf32, #tpu.memory_space<vmem>>, vector<1x1x4xf32>
    %1 = vector.shape_cast %0 : vector<1x1x4xf32> to vector<1x4xf32>
    %c0_2 = arith.constant 0 : index
    %c0_3 = arith.constant 0 : index
    %c0_4 = arith.constant 0 : index
    %2 = vector.load %arg4[%c0_2, %c0_3, %c0_4] : memref<1x4x256xf32, #tpu.memory_space<vmem>>, vector<1x4x256xf32>
    %3 = vector.shape_cast %2 : vector<1x4x256xf32> to vector<4x256xf32>
    %cst = arith.constant dense<0.000000e+00> : vector<1x256xf32>
    %4 = tpu.matmul %1, %3, %cst {dimension_numbers = #tpu.dot_dimension_numbers<[1], [0], [0], [1], [0, 0, 1, 1], [], []>} : vector<1x4xf32>, vector<4x256xf32>, vector<1x256xf32> -> vector<1x256xf32>
    %c0_5 = arith.constant 0 : index
    %5 = memref.load %arg3[%c0_5] : memref<1xf32, #tpu.memory_space<smem>>
    %6 = vector.broadcast %5 : f32 to vector<1x256xf32>
    %7 = arith.addf %4, %6 : vector<1x256xf32>
    %c0_6 = arith.constant 0 : index
    %c0_7 = arith.constant 0 : index
    %c0_8 = arith.constant 0 : index
    %8 = vector.load %arg5[%c0_6, %c0_7, %c0_8] : memref<1x1x256xf32, #tpu.memory_space<vmem>>, vector<1x1x256xf32>
    %9 = vector.shape_cast %8 : vector<1x1x256xf32> to vector<1x256xf32>
    %10 = vector.shape_cast %7 : vector<1x256xf32> to vector<1x1x256xf32>
    tpu.vector_store %arg5[%c0_6, %c0_7, %c0_8], %10 {strides = array<i32>} : memref<1x1x256xf32, #tpu.memory_space<vmem>>, vector<1x1x256xf32>,
    return
  }
  func.func @transform_0(%arg0: i32, %arg1: i32) -> (i32, i32, i32) {
    %c0_i32 = arith.constant 0 : i32
    %c0_i32_0 = arith.constant 0 : i32
    %c0_i32_1 = arith.constant 0 : i32
    return %arg0, %c0_i32, %c0_i32_0 : i32, i32, i32
  }
  func.func @transform_1(%arg0: i32, %arg1: i32) -> i32 {
    %c0_i32 = arith.constant 0 : i32
    %c0_i32_0 = arith.constant 0 : i32
    return %c0_i32 : i32
  }
  func.func @transform_2(%arg0: i32, %arg1: i32) -> (i32, i32, i32) {
    %c0_i32 = arith.constant 0 : i32
    %c0_i32_0 = arith.constant 0 : i32
    return %arg0, %c0_i32, %arg1 : i32, i32, i32
  }
  func.func @transform_3(%arg0: i32, %arg1: i32) -> (i32, i32, i32) {
    %c0_i32 = arith.constant 0 : i32
    %c0_i32_0 = arith.constant 0 : i32
    return %arg0, %c0_i32, %arg1 : i32, i32, i32
  }
}

</mosaic_0001>

<llo_original>
// kernel: tpu_custom_call.1
$region0: #{tpu_custom_call.1}
  #allocation0 [shape = 'u32[]', space=smem, size = 0x4, offset = 0x4, fixed_abs, tag = 'smem constant byte address 0x4 - core index']
  #allocation1 [shape = 'u32[144,128]{1,0:T(1,128)}', space=vmem, size = 0x12000, scoped, tag = 'internal scratch']
  #allocation2 [shape = 'f32[1]{0:T(128)S(6)}', space=smem, size = 0x200, scoped, tag = 'scoped memory for tpu_custom_call.1']
  %s0 = inlined_call_operand.vmem [shape: f32[2,1,4], index: 0, kind: input, shape index: {}]
  %s1 = inlined_call_operand.<no memory space> [shape: f32[1], index: 1, kind: input, shape index: {}]
  %s2 = inlined_call_operand.hbm [shape: f32[2,4,256], index: 2, kind: input, shape index: {}]
  %s3 = inlined_call_operand.hbm [shape: f32[2,1,256], index: 3, kind: output, shape index: {}]
  %s4 = sld [smem:[#allocation0]]
  $region49: #{tpu_custom_call.1} parent=0
    _
  %s6 = ssub.s32 1, %s4
  %s7 = scalar_select 0, %s6, %s4
  %8 = sst [smem:[#allocation2]] %s1
  $region1: #{tpu_custom_call.1} parent=0
    #allocation3 [shape = 'u8[8192]{0}', space=vmem, size = 0x2000, scoped, tag = 'input window, operand 2']
    #allocation4 [shape = 's32[2]{0}', space=sflag, size = 0x8, scoped, tag = 'scoped memory for tpu_custom_call.1']
    #allocation5 [shape = 's32[2]{0}', space=sflag, size = 0x8, scoped, tag = 'scoped memory for tpu_custom_call.1']
    #allocation6 [shape = 'u8[2048]{0}', space=vmem, size = 0x800, scoped, tag = 'output window, operand 0']
    %9 = vsyncpa [#allocation4], 0
    %s10 = scalar_lea.sflag [#allocation4], 1
    %11 = vsyncpa %s10, 0
    %12 = vsyncpa [#allocation5], 0
    %s13 = scalar_lea.sflag [#allocation5], 1
    %14 = vsyncpa %s13, 0
    loop: start=0, step=1, limit=4
    $region2: #{tpu_custom_call.1} parent=1 // loop_pre_header
      _
    $region3: #{tpu_custom_call.1} parent=1 // loop_header
      %s16 = sphi 0, %s20
      %p17 = scmp.ge.s32.totalorder %s16, 4
      %s23 = sphi 0, %s35
      %s24 = sphi 0, %s31
      %s25 = sphi 0, %s23
      %s26 = sphi 0, %s24
      %s27 = sphi 0, %s25
      %s28 = sphi 0, %s26
      %s38 = sphi 0, %s40
      %s41 = sphi 0, %s38
      %s42 = sphi 0, %s41
      %s58 = sphi 0, %s42
      %s62 = sphi 0, %s62
      %s64 = sphi 0, %s62
      %s65 = sphi 0, %s64
      %s79 = sphi 0, %s65
      %s87 = sphi 0, %s89
      %s90 = sphi 0, %s87
      %s91 = sphi 0, %s90
      %s107 = sphi 0, %s91
      %s115 = sphi 0, %s117
      %s118 = sphi 0, %s115
      %s119 = sphi 0, %s118
      %s135 = sphi 0, %s119
    $region4: #{tpu_custom_call.1} parent=1 // loop_header_branch
      %19 = sbr.rel (%p17) target = $region8
    $region5: #{tpu_custom_call.1} parent=1 // loop_body
      %s21 = ssub.s32 %s16, 1
      %s22 = ssub.s32 %s16, 2
      %s29 = sadd.s32 1, %s24
      %p30 = scmp.ge.s32.totalorder %s29, 1
      %s31 = scalar_select %p30, 0, %s29
      %s32 = sadd.s32 1, %s23
      %s33 = scalar_select %p30, %s32, %s23
      %p34 = scmp.ge.s32.totalorder %s33, 2
      %s35 = scalar_select %p34, 0, %s33
      %s36 = ssub.s32 %s23, %s35
      %p37 = scmp.eq.s32.totalorder %s36, 0
      %s39 = sadd.s32 %s38, 1
      %s40 = scalar_select %p37, %s38, %s39
      %p43 = pneg %p37
      %p44 = scmp.eq.s32.totalorder %s16, 1
      %p45 = por %p43, %p44
      %p46 = scmp.ne.s32.totalorder %s38, %s41
      %p47 = scmp.eq.s32.totalorder %s16, 0
      %p48 = por %p46, %p47
      %p49 = scmp.ne.s32.totalorder %s38, %s41
      %p50 = scmp.eq.s32.totalorder %s21, 1
      %p51 = por %p49, %p50
      %p52 = scmp.ne.s32.totalorder %s41, %s42
      %p53 = scmp.eq.s32.totalorder %s21, 0
      %p54 = por %p52, %p53
      %p55 = scmp.ne.s32.totalorder %s41, %s42
      %p56 = scmp.eq.s32.totalorder %s22, 1
      %p57 = por %p55, %p56
      %p59 = scmp.ne.s32.totalorder %s42, %s58
      %p60 = scmp.eq.s32.totalorder %s22, 0
      %p61 = por %p59, %p60
      %s63 = sadd.s32 %s62, 1
      %p66 = scmp.eq.s32.totalorder %s16, 1
      %p67 = scmp.ne.s32.totalorder %s62, %s64
      %p68 = scmp.eq.s32.totalorder %s16, 0
      %p69 = por %p67, %p68
      %p70 = scmp.ne.s32.totalorder %s62, %s64
      %p71 = scmp.eq.s32.totalorder %s21, 1
      %p72 = por %p70, %p71
      %p73 = scmp.ne.s32.totalorder %s64, %s65
      %p74 = scmp.eq.s32.totalorder %s21, 0
      %p75 = por %p73, %p74
      %p76 = scmp.ne.s32.totalorder %s64, %s65
      %p77 = scmp.eq.s32.totalorder %s22, 1
      %p78 = por %p76, %p77
      %p80 = scmp.ne.s32.totalorder %s65, %s79
      %p81 = scmp.eq.s32.totalorder %s22, 0
      %p82 = por %p80, %p81
      %s83 = ssub.s32 %s23, %s35
      %s84 = ssub.s32 %s24, %s31
      %s85 = sor.u32 %s83, %s84
      %p86 = scmp.eq.s32.totalorder %s85, 0
      %s88 = sadd.s32 %s87, 1
      %s89 = scalar_select %p86, %s87, %s88
      %p92 = pneg %p86
      %p93 = scmp.eq.s32.totalorder %s16, 1
      %p94 = por %p92, %p93
      %p95 = scmp.ne.s32.totalorder %s87, %s90
      %p96 = scmp.eq.s32.totalorder %s16, 0
      %p97 = por %p95, %p96
      %p98 = scmp.ne.s32.totalorder %s87, %s90
      %p99 = scmp.eq.s32.totalorder %s21, 1
      %p100 = por %p98, %p99
      %p101 = scmp.ne.s32.totalorder %s90, %s91
      %p102 = scmp.eq.s32.totalorder %s21, 0
      %p103 = por %p101, %p102
      %p104 = scmp.ne.s32.totalorder %s90, %s91
      %p105 = scmp.eq.s32.totalorder %s22, 1
      %p106 = por %p104, %p105
      %p108 = scmp.ne.s32.totalorder %s91, %s107
      %p109 = scmp.eq.s32.totalorder %s22, 0
      %p110 = por %p108, %p109
      %s111 = ssub.s32 %s23, %s35
      %s112 = ssub.s32 %s24, %s31
      %s113 = sor.u32 %s111, %s112
      %p114 = scmp.eq.s32.totalorder %s113, 0
      %s116 = sadd.s32 %s115, 1
      %s117 = scalar_select %p114, %s115, %s116
      %p120 = pneg %p114
      %p121 = scmp.eq.s32.totalorder %s16, 1
      %p122 = por %p120, %p121
      %p123 = scmp.ne.s32.totalorder %s115, %s118
      %p124 = scmp.eq.s32.totalorder %s16, 0
      %p125 = por %p123, %p124
      %p126 = scmp.ne.s32.totalorder %s115, %s118
      %p127 = scmp.eq.s32.totalorder %s21, 1
      %p128 = por %p126, %p127
      %p129 = scmp.ne.s32.totalorder %s118, %s119
      %p130 = scmp.eq.s32.totalorder %s21, 0
      %p131 = por %p129, %p130
      %p132 = scmp.ne.s32.totalorder %s118, %s119
      %p133 = scmp.eq.s32.totalorder %s22, 1
      %p134 = por %p132, %p133
      %p136 = scmp.ne.s32.totalorder %s119, %s135
      %p137 = scmp.eq.s32.totalorder %s22, 0
      %p138 = por %p136, %p137
      %p139 = scmp.le.s32.totalorder 1, %s16
      %p140 = scmp.lt.s32.totalorder %s16, 3
      %p141 = pnand %p139, %p140
      %p142 = pneg %p141
      // Predicated region
      $region9: #{tpu_custom_call.1} parent=5 // pred_check
        _
      $region10: #{tpu_custom_call.1} parent=5 // pred_check_branch
        %144 = sbr.rel (%p141) target = $region12
      $region11: #{tpu_custom_call.1} parent=5 // pred_region
        %s145 = ssub.s32 %s16, 1
        // Predicated region
        $region13: #{tpu_custom_call.1} parent=11 // pred_check
          %p146 = pneg %p75
        $region14: #{tpu_custom_call.1} parent=11 // pred_check_branch
          %148 = sbr.rel (%p146) target = $region16
        $region15: #{tpu_custom_call.1} parent=11 // pred_region
          _
        $region16: #{tpu_custom_call.1} parent=11 // pred_fallthru
          _
      $region12: #{tpu_custom_call.1} parent=5 // pred_fallthru
        _
      %p149 = scmp.lt.s32.totalorder %s16, 2
      // Predicated region
      $region17: #{tpu_custom_call.1} parent=5 // pred_check
        %p150 = pneg %p149
      $region18: #{tpu_custom_call.1} parent=5 // pred_check_branch
        %152 = sbr.rel (%p150) target = $region20
      $region19: #{tpu_custom_call.1} parent=5 // pred_region
        // Predicated region
        $region21: #{tpu_custom_call.1} parent=19 // pred_check
          %p153 = pneg %p48
        $region22: #{tpu_custom_call.1} parent=19 // pred_check_branch
          %155 = sbr.rel (%p153) target = $region24
        $region23: #{tpu_custom_call.1} parent=19 // pred_region
          %p156 = scmp.lt.s32.totalorder %s23, 1
          %s157 = scalar_select %p156, %s23, 1
          %s158 = scalar_lea.vmem %s0, %s157
        $region24: #{tpu_custom_call.1} parent=19 // pred_fallthru
          _
        // Predicated region
        $region25: #{tpu_custom_call.1} parent=19 // pred_check
          %p159 = pneg %p97
        $region26: #{tpu_custom_call.1} parent=19 // pred_check_branch
          %161 = sbr.rel (%p159) target = $region28
        $region27: #{tpu_custom_call.1} parent=19 // pred_region
          %s162 = sand.u32 %s87, 1
          %s163 = scalar_lea.sflag [#allocation4], %s162
          %s164 = sand.u32 %s87, 1
          %s165 = smul.addr %s164, 8
          %s166 = scalar_lea.vmem [#allocation3], %s165
          %s167 = smul.u32 2, %s24
          %s169 = ssub.s32 128, 128
          %170 = vsyncadd %s163, %s169
          %s171 = smul.addr %s23, 2
          %s172 = sadd.s32 %s167, %s171
          %s173 = smul.addr %s172, 64
          %s174 = scalar_lea.hbm %s2, %s173
          %s176 = sshll.u32 %s166, 4
          %s177 = int_to_ptr.vmem [resolvable:$true] %s176
          %179 = dma.hbm_to_vmem [thread:$0]  %s174, 128, %s177, %s163
        $region28: #{tpu_custom_call.1} parent=19 // pred_fallthru
          _
      $region20: #{tpu_custom_call.1} parent=5 // pred_fallthru
        _
      %p180 = scmp.le.s32.totalorder 1, %s16
      %p181 = scmp.lt.s32.totalorder %s16, 3
      %p182 = pnand %p180, %p181
      %p183 = pneg %p182
      // Predicated region
      $region29: #{tpu_custom_call.1} parent=5 // pred_check
        _
      $region30: #{tpu_custom_call.1} parent=5 // pred_check_branch
        %185 = sbr.rel (%p182) target = $region32
      $region31: #{tpu_custom_call.1} parent=5 // pred_region
        %s186 = ssub.s32 %s16, 1
        %s187 = sand.u32 %s90, 1
        %s188 = scalar_lea.sflag [#allocation4], %s187
        %s189 = sand.u32 %s90, 1
        %s190 = smul.addr %s189, 8
        %s191 = scalar_lea.vmem [#allocation3], %s190
        // Predicated region
        $region33: #{tpu_custom_call.1} parent=31 // pred_check
          %p192 = pneg %p103
        $region34: #{tpu_custom_call.1} parent=31 // pred_check_branch
          %194 = sbr.rel (%p192) target = $region36
        $region35: #{tpu_custom_call.1} parent=31 // pred_region
          %195 = dma.done %s188, 128
        $region36: #{tpu_custom_call.1} parent=31 // pred_fallthru
          _
        %p196 = scmp.lt.s32.totalorder %s25, 1
        %s197 = scalar_select %p196, %s25, 1
        %s198 = scalar_lea.vmem %s0, %s197
        %p199 = pneg %p54
        %p200 = pneg %p51
        %p201 = pneg %p75
        %p202 = pneg %p72
        %s203 = sand.u32 %s90, 1
        %s204 = scalar_lea.sflag [#allocation4], %s203
        %s205 = sand.u32 %s90, 1
        %s206 = smul.addr %s205, 8
        %s207 = scalar_lea.vmem [#allocation3], %s206
        %p208 = pneg %p103
        %p209 = pneg %p100
        %p210 = pneg %p131
        %p211 = pneg %p128
        %s212 = sand.u32 %s118, 1
        %s213 = scalar_lea.sflag [#allocation5], %s212
        %s214 = sand.u32 %s118, 1
        %s215 = smul.addr %s214, 2
        %s216 = scalar_lea.vmem [#allocation6], %s215
        %p217 = scmp.lt.s32.totalorder %s25, 1
        %s218 = scalar_select %p217, %s25, 1
        %s219 = scalar_lea.vmem %s0, %s218
        %s220 = smul.u32 2, %s26
        %s221 = smul.u32 2, %s26
        %v222 = vld [vmem:[%s219] sm:$0x1]
        %v223 = vld [vmem:[%s191] sm:$0xff]
        %s224 = sld [smem:[#allocation2]]
        %v225 = vstv %s224
        %v227 = vcombine.high %v223, %v223
        %vm228 = vcmask 31744
        %v230 = vsel %vm228, %v222, 0
        %vm232 = vcmask 1043456
        %v233 = vsel %vm232, %v223, 0
        %v235 = vsel %vm232, %v227, 0
        %237 = vmatprep.subr.mxu0 0.0
        %238 = vmatpush1.msra.mxu0 0.0
        %239 = vmatprep.subr.mxu0 0.0
        %240 = vmatpush1.msra.mxu0 0.0
        %241 = vmatprep.subr.mxu0 0.0
        %242 = vmatpush1.msra.mxu0 0.0
        %243 = vmatprep.subr.mxu0 0.0
        %244 = vmatpush1.msra.mxu0 0.0
        %245 = vmatprep.subr.mxu0 0.0
        %246 = vmatpush1.msra.mxu0 0.0
        %247 = vmatprep.subr.mxu0 0.0
        %248 = vmatpush1.msra.mxu0 0.0
        %249 = vmatprep.subr.mxu0 0.0
        %250 = vmatpush1.msra.mxu0 0.0
        %251 = vmatprep.subr.mxu0 0.0
        %252 = vmatpush1.msra.mxu0 0.0
        %253 = vmatprep.subr.mxu0 0.0
        %254 = vmatpush1.msra.mxu0 0.0
        %255 = vmatprep.subr.mxu0 0.0
        %256 = vmatpush1.msra.mxu0 0.0
        %257 = vmatprep.subr.mxu0 0.0
        %258 = vmatpush1.msra.mxu0 0.0
        %259 = vmatprep.subr.mxu0 0.0
        %260 = vmatpush1.msra.mxu0 0.0
        %261 = vmatprep.subr.mxu0 0.0
        %262 = vmatpush1.msra.mxu0 0.0
        %263 = vmatprep.subr.mxu0 0.0
        %264 = vmatpush1.msra.mxu0 0.0
        %265 = vmatprep.subr.mxu0 0.0
        %266 = vmatpush1.msra.mxu0 0.0
        %267 = vmatprep.subr.mxu0 %v235
        %268 = vmatpush1.msra.mxu0 %v233
        %269 = vmatprep.subr.mxu0 0.0
        %270 = vmatpush2.msra.mxu0 0.0
        %271 = vmatprep.subr.mxu0 0.0
        %272 = vmatpush2.msra.mxu0 0.0
        %273 = vmatprep.subr.mxu0 0.0
        %274 = vmatpush2.msra.mxu0 0.0
        %275 = vmatprep.subr.mxu0 0.0
        %276 = vmatpush2.msra.mxu0 0.0
        %277 = vmatprep.subr.mxu0 0.0
        %278 = vmatpush2.msra.mxu0 0.0
        %279 = vmatprep.subr.mxu0 0.0
        %280 = vmatpush2.msra.mxu0 0.0
        %281 = vmatprep.subr.mxu0 0.0
        %282 = vmatpush2.msra.mxu0 0.0
        %283 = vmatprep.subr.mxu0 0.0
        %284 = vmatpush2.msra.mxu0 0.0
        %285 = vmatprep.subr.mxu0 0.0
        %286 = vmatpush2.msra.mxu0 0.0
        %287 = vmatprep.subr.mxu0 0.0
        %288 = vmatpush2.msra.mxu0 0.0
        %289 = vmatprep.subr.mxu0 0.0
        %290 = vmatpush2.msra.mxu0 0.0
        %291 = vmatprep.subr.mxu0 0.0
        %292 = vmatpush2.msra.mxu0 0.0
        %293 = vmatprep.subr.mxu0 0.0
        %294 = vmatpush2.msra.mxu0 0.0
        %295 = vmatprep.subr.mxu0 0.0
        %296 = vmatpush2.msra.mxu0 0.0
        %297 = vmatprep.subr.mxu0 0.0
        %298 = vmatpush2.msra.mxu0 0.0
        %299 = vmatprep.subr.mxu0 0.0
        %300 = vmatpush2.msra.mxu0 0.0
        %301 = vmatprep.mubr.f32.mxu0 0.0
        %302 = vmatmul.mubr.f32.gmra.mxu0 %v230
        %v303 = vpop.f32.mrf.mxu0
        %v304 = vadd.f32 %v225, %v303
        %v305 = vpop.f32.mrf.mxu0
        %v306 = vadd.f32 %v225, %v305
        %307 = vdwg.mxu0
        %v310 = vcombine.low %v304, %v306
        %v312 = vunpack.c.l.s4 1966171168
        %v313 = vunpack.c.0.s8 %v312
        %v314 = vlaneseq
        %v315 = vshrl.u32 %v314, 7
        %v316 = vsub.s32 %v313, %v315
        %v317 = vrot.slane %v310, %v316
        %v319 = vunpack.c.l.s4 1966171168
        %v320 = vunpack.c.0.s8 %v319
        %v321 = vlaneseq
        %v322 = vshrl.u32 %v321, 7
        %v323 = vsub.s32 %v320, %v322
        %v324 = vrot.slane %v317, %v323
        %v326 = vlaneseq
        %vm327 = vcmp.ge.s32.totalorder %v326, 0
        %vm328 = vcmp.lt.s32.totalorder %v326, 256
        %vm329 = vmand %vm327, %vm328
        %330 = vst.msk [vmem:[%s216] sm:$0x3] %vm329, %v324
        %s331 = sand.u32 %s118, 1
        %s332 = scalar_lea.sflag [#allocation5], %s331
        %s333 = sand.u32 %s118, 1
        %s334 = smul.addr %s333, 2
        %s335 = scalar_lea.vmem [#allocation6], %s334
        // Predicated region
        $region37: #{tpu_custom_call.1} parent=31 // pred_check
          %p336 = pneg %p128
        $region38: #{tpu_custom_call.1} parent=31 // pred_check_branch
          %338 = sbr.rel (%p336) target = $region40
        $region39: #{tpu_custom_call.1} parent=31 // pred_region
          %s339 = smul.u32 2, %s26
          %s341 = ssub.s32 32, 32
          %342 = vsyncadd %s332, %s341
          %s343 = smul.addr %s25, 2
          %s344 = sadd.s32 %s339, %s343
          %s345 = smul.addr %s344, 16
          %s346 = scalar_lea.hbm %s3, %s345
          %s348 = sshll.u32 %s335, 4
          %s349 = int_to_ptr.vmem [resolvable:$true] %s348
          %351 = dma.vmem_to_hbm [thread:$0]  %s349, 32, %s346, %s332
        $region40: #{tpu_custom_call.1} parent=31 // pred_fallthru
          _
      $region32: #{tpu_custom_call.1} parent=5 // pred_fallthru
        _
      %p352 = scmp.le.s32.totalorder 2, %s16
      // Predicated region
      $region41: #{tpu_custom_call.1} parent=5 // pred_check
        %p353 = pneg %p352
      $region42: #{tpu_custom_call.1} parent=5 // pred_check_branch
        %355 = sbr.rel (%p353) target = $region44
      $region43: #{tpu_custom_call.1} parent=5 // pred_region
        %s356 = ssub.s32 %s16, 2
        // Predicated region
        $region45: #{tpu_custom_call.1} parent=43 // pred_check
          %p357 = pneg %p134
        $region46: #{tpu_custom_call.1} parent=43 // pred_check_branch
          %359 = sbr.rel (%p357) target = $region48
        $region47: #{tpu_custom_call.1} parent=43 // pred_region
          %s360 = sand.u32 %s119, 1
          %s361 = scalar_lea.sflag [#allocation5], %s360
          %s362 = sand.u32 %s119, 1
          %s363 = smul.addr %s362, 2
          %s364 = scalar_lea.vmem [#allocation6], %s363
          %365 = dma.done %s361, 32
        $region48: #{tpu_custom_call.1} parent=43 // pred_fallthru
          _
      $region44: #{tpu_custom_call.1} parent=5 // pred_fallthru
        _
    $region6: #{tpu_custom_call.1} parent=1 // loop_footer
      %s20 = sadd.s32 1, %s16
    $region7: #{tpu_custom_call.1} parent=1 // loop_footer_branch
      %15 = sbr.rel target = $region3
    $region8: #{tpu_custom_call.1} parent=1 // loop_exit
      _
    %366 = vsyncpa [#allocation4], 1
    %s367 = scalar_lea.sflag [#allocation4], 1
    %368 = vsyncpa %s367, 1
    %369 = vsyncpa [#allocation5], 1
    %s370 = scalar_lea.sflag [#allocation5], 1
    %371 = vsyncpa %s370, 1

</llo_original>
